<compile_context>
chip_gen: v7x
topology: tpu7x:2x2x1
jax: 0.10.0
libtpu: 0.0.40
codegen_flags: <defaults>
</compile_context>

<pallas_src>
import jax
import jax.numpy as jnp
from jax.experimental import pallas as pl
from jax.experimental.pallas import tpu as pltpu


def _mlp_kernel(x_ref, w1_ref, w2_ref, w34_ref, o_ref):
    """Fused 7->5->8->(6->4) MLP on a feature-major, batch-folded tile.

    x_ref  : (7*F, T)   bf16 — F batch sub-chunks stacked on the sublane axis
    w1_ref : (5*F, 7*F) bf16 — kron(I_F, W1)
    w2_ref : (8*F, 5*F) bf16 — kron(I_F, W2)
    w34_ref: (4*F, 8*F) bf16 — kron(I_F, W4 @ W3)
    o_ref  : (4*F, T)   bf16
    """
    x = x_ref[...]
    # Linear(7, 5, bias=False) + ReLU (bf16 operands, f32 MXU accumulation;
    # keeping the intermediate bf16 casts is essential: f32 MXU operands would
    # 3x+ the vmatmul push count).
    h = jnp.dot(w1_ref[...], x, preferred_element_type=jnp.float32)
    h = jnp.maximum(h, 0.0).astype(jnp.bfloat16)
    # Linear(5, 8, bias=False) + ReLU
    h = jnp.dot(w2_ref[...], h, preferred_element_type=jnp.float32)
    h = jnp.maximum(h, 0.0).astype(jnp.bfloat16)
    # Folded Linear(8, 6) @ Linear(6, 4) (no nonlinearity between them)
    o_ref[...] = jnp.dot(
        w34_ref[...], h, preferred_element_type=jnp.float32
    ).astype(o_ref.dtype)


def multiple_linear(x, params, *, tile=256 * 1024, fold=16):
    """x: (N, 7) float32. params: PyTorch-layout (out, in) weights, no biases.

    Returns (N, 4) bfloat16 (f32 accumulation happens inside the kernel).

    tile = batch elements per grid step (rounded to a multiple of 128*fold).
           Footprint ~= 22 B / batch element double-buffered, so the 256K
           default is ~11 MiB — safe under the 48 MiB VMEM limit on v7x and
           large enough (>1 MiB/block) to amortize the ~0.35 us step overhead.
    fold = batch sub-chunks stacked on the sublane axis; 16 keeps every
           block-diagonal weight inside one 128x128 MXU stationary tile.
    """
    assert fold in (8, 16), "fold must keep 8*fold <= 128 with aligned sublanes"
    n, feat_in = x.shape
    assert feat_in == 7

    lanes = 128
    grain = lanes * fold                       # smallest useful batch granule
    n_grains = pl.cdiv(n, grain)
    req_grains = max(1, tile // grain)
    if n_grains >= 2:
        # Ensure >= 2 grid steps so the 'parallel' axis can split across both
        # v7x TensorCores (no-op on single-TC v5e/v6e).
        tile_grains = max(1, min(req_grains, pl.cdiv(n_grains, 2)))
    else:
        tile_grains = 1
    grid_len = pl.cdiv(n_grains, tile_grains)
    n_pad = grid_len * tile_grains * grain     # padded batch size
    cols = n_pad // fold                       # columns of the blocked layout
    tile_cols = tile_grains * lanes            # columns per grid step

    # Fold Linear(8->6) @ Linear(6->4), then expand all weights block-diagonally.
    eye = jnp.eye(fold, dtype=jnp.float32)
    w34 = params["w4"].astype(jnp.float32) @ params["w3"].astype(jnp.float32)
    w1b = jnp.kron(eye, params["w1"].astype(jnp.float32)).astype(jnp.bfloat16)   # (5F, 7F)
    w2b = jnp.kron(eye, params["w2"].astype(jnp.float32)).astype(jnp.bfloat16)   # (8F, 5F)
    w34b = jnp.kron(eye, w34).astype(jnp.bfloat16)                               # (4F, 8F)

    # Blocked feature-major activations: batch chunk f occupies sublane rows
    # [7f, 7f+7).  Zero-padded tail is safe because every layer is bias-free
    # (padded columns stay 0 through the ReLUs and are sliced off below).
    x_pad = jnp.zeros((n_pad, 7), jnp.bfloat16).at[:n].set(x.astype(jnp.bfloat16))
    x_blk = x_pad.reshape(fold, cols, 7).transpose(0, 2, 1).reshape(7 * fold, cols)

    out_blk = pl.pallas_call(
        _mlp_kernel,
        out_shape=jax.ShapeDtypeStruct((4 * fold, cols), jnp.bfloat16),
        grid=(cols // tile_cols,),
        in_specs=[
            # Activations: tiled, double-buffered.  (Optionally sweep
            # pipeline_mode=pl.Buffered(3) here once DMA-bound; default depth
            # is usually within ~2% of roofline at these tile sizes.)
            pl.BlockSpec((7 * fold, tile_cols), lambda i: (0, i)),
            # Weights: constant index_map -> VMEM-resident across the grid.
            pl.BlockSpec((5 * fold, 7 * fold), lambda i: (0, 0)),
            pl.BlockSpec((8 * fold, 5 * fold), lambda i: (0, 0)),
            pl.BlockSpec((4 * fold, 8 * fold), lambda i: (0, 0)),
        ],
        out_specs=pl.BlockSpec((4 * fold, tile_cols), lambda i: (0, i)),
        compiler_params=pltpu.CompilerParams(
            dimension_semantics=("parallel",),
            vmem_limit_bytes=48 * 1024 * 1024,
        ),
    )(x_blk, w1b, w2b, w34b)

    # Un-fold the blocked output back to batch-major (N, 4).
    out = out_blk.reshape(fold, 4, cols).transpose(0, 2, 1).reshape(n_pad, 4)
    return out[:n]


def init_params(key):
    """nn.Linear default init (uniform(-1/sqrt(fan_in), 1/sqrt(fan_in))), no biases."""
    def lin(k, out_f, in_f):
        bound = 1.0 / jnp.sqrt(jnp.float32(in_f))
        return jax.random.uniform(k, (out_f, in_f), jnp.float32, -bound, bound)

    k1, k2, k3, k4 = jax.random.split(key, 4)
    return {
        "w1": lin(k1, 5, 7),   # nn.Linear(7, 5, bias=False)
        "w2": lin(k2, 8, 5),   # nn.Linear(5, 8, bias=False)
        "w3": lin(k3, 6, 8),   # nn.Linear(8, 6, bias=False)
        "w4": lin(k4, 4, 6),   # nn.Linear(6, 4, bias=False)
    }


def reference(x, p):
    h = jnp.maximum(x @ p["w1"].T, 0.0)
    h = jnp.maximum(h @ p["w2"].T, 0.0)
    h = h @ p["w3"].T
    return h @ p["w4"].T


if __name__ == "__main__":
    key = jax.random.PRNGKey(0)
    kx, kp = jax.random.split(key)
    x = jax.random.normal(kx, (8, 7), jnp.float32)  # batch=8, in_features=7
    params = init_params(kp)

    out = multiple_linear(x, params)
    out = jax.block_until_ready(out)

    ref = reference(x, params)
    assert out.shape == (8, 4), out.shape
    # bf16 operands + bf16 output (f32 accumulation on the MXU) -> bf16 tolerance.
    assert jnp.allclose(out.astype(jnp.float32), ref, atol=2e-2, rtol=2e-2), (
        "mismatch vs pure-JAX reference"
    )
    print("KERNEL_OK")
</pallas_src>

<mosaic_0001>
module attributes {stable_mosaic.version = 11 : i64} {
  func.func @_mlp_kernel(%arg0: i32, %arg1: memref<112x128xbf16, #tpu.memory_space<vmem>>, %arg2: memref<80x112xbf16, #tpu.memory_space<vmem>>, %arg3: memref<128x80xbf16, #tpu.memory_space<vmem>>, %arg4: memref<64x128xbf16, #tpu.memory_space<vmem>>, %arg5: memref<64x128xbf16, #tpu.memory_space<vmem>>) attributes {dimension_semantics = [#tpu.dimension_semantics<parallel>], iteration_bounds = array<i64: 1>, scalar_prefetch = 0 : i64, scratch_operands = 0 : i64, tpu.core_type = #tpu.core_type<tc>, window_params = [{transform_indices = @transform_0, window_bounds = array<i64: 112, 128>}, {pipeline_mode = #tpu.pipeline_mode<synchronous>, transform_indices = @transform_1, window_bounds = array<i64: 80, 112>}, {pipeline_mode = #tpu.pipeline_mode<synchronous>, transform_indices = @transform_2, window_bounds = array<i64: 128, 80>}, {pipeline_mode = #tpu.pipeline_mode<synchronous>, transform_indices = @transform_3, window_bounds = array<i64: 64, 128>}, {transform_indices = @transform_4, window_bounds = array<i64: 64, 128>}]} {
    %c0 = arith.constant 0 : index
    %c0_0 = arith.constant 0 : index
    %0 = vector.load %arg1[%c0, %c0_0] : memref<112x128xbf16, #tpu.memory_space<vmem>>, vector<112x128xbf16>
    %c0_1 = arith.constant 0 : index
    %c0_2 = arith.constant 0 : index
    %1 = vector.load %arg2[%c0_1, %c0_2] : memref<80x112xbf16, #tpu.memory_space<vmem>>, vector<80x112xbf16>
    %cst = arith.constant dense<0.000000e+00> : vector<80x128xf32>
    %2 = tpu.matmul %1, %0, %cst {dimension_numbers = #tpu.dot_dimension_numbers<[1], [0], [0], [1], [0, 0, 1, 1], [], []>} : vector<80x112xbf16>, vector<112x128xbf16>, vector<80x128xf32> -> vector<80x128xf32>
    %cst_3 = arith.constant 0.000000e+00 : f32
    %3 = vector.broadcast %cst_3 : f32 to vector<80x128xf32>
    %4 = arith.maximumf %2, %3 : vector<80x128xf32>
    %5 = arith.truncf %4 : vector<80x128xf32> to vector<80x128xbf16>
    %c0_4 = arith.constant 0 : index
    %c0_5 = arith.constant 0 : index
    %6 = vector.load %arg3[%c0_4, %c0_5] : memref<128x80xbf16, #tpu.memory_space<vmem>>, vector<128x80xbf16>
    %cst_6 = arith.constant dense<0.000000e+00> : vector<128x128xf32>
    %7 = tpu.matmul %6, %5, %cst_6 {dimension_numbers = #tpu.dot_dimension_numbers<[1], [0], [0], [1], [0, 0, 1, 1], [], []>} : vector<128x80xbf16>, vector<80x128xbf16>, vector<128x128xf32> -> vector<128x128xf32>
    %cst_7 = arith.constant 0.000000e+00 : f32
    %8 = vector.broadcast %cst_7 : f32 to vector<128x128xf32>
    %9 = arith.maximumf %7, %8 : vector<128x128xf32>
    %10 = arith.truncf %9 : vector<128x128xf32> to vector<128x128xbf16>
    %c0_8 = arith.constant 0 : index
    %c0_9 = arith.constant 0 : index
    %11 = vector.load %arg4[%c0_8, %c0_9] : memref<64x128xbf16, #tpu.memory_space<vmem>>, vector<64x128xbf16>
    %cst_10 = arith.constant dense<0.000000e+00> : vector<64x128xf32>
    %12 = tpu.matmul %11, %10, %cst_10 {dimension_numbers = #tpu.dot_dimension_numbers<[1], [0], [0], [1], [0, 0, 1, 1], [], []>} : vector<64x128xbf16>, vector<128x128xbf16>, vector<64x128xf32> -> vector<64x128xf32>
    %13 = arith.truncf %12 : vector<64x128xf32> to vector<64x128xbf16>
    %c0_11 = arith.constant 0 : index
    %c0_12 = arith.constant 0 : index
    %14 = vector.load %arg5[%c0_11, %c0_12] : memref<64x128xbf16, #tpu.memory_space<vmem>>, vector<64x128xbf16>
    tpu.vector_store %arg5[%c0_11, %c0_12], %13 {strides = array<i32>} : memref<64x128xbf16, #tpu.memory_space<vmem>>, vector<64x128xbf16>,
    return
  }
  func.func @transform_0(%arg0: i32) -> (i32, i32) {
    %c0_i32 = arith.constant 0 : i32
    %c0_i32_0 = arith.constant 0 : i32
    return %c0_i32, %arg0 : i32, i32
  }
  func.func @transform_1(%arg0: i32) -> (i32, i32) {
    %c0_i32 = arith.constant 0 : i32
    %c0_i32_0 = arith.constant 0 : i32
    %c0_i32_1 = arith.constant 0 : i32
    return %c0_i32, %c0_i32_0 : i32, i32
  }
  func.func @transform_2(%arg0: i32) -> (i32, i32) {
    %c0_i32 = arith.constant 0 : i32
    %c0_i32_0 = arith.constant 0 : i32
    %c0_i32_1 = arith.constant 0 : i32
    return %c0_i32, %c0_i32_0 : i32, i32
  }
  func.func @transform_3(%arg0: i32) -> (i32, i32) {
    %c0_i32 = arith.constant 0 : i32
    %c0_i32_0 = arith.constant 0 : i32
    %c0_i32_1 = arith.constant 0 : i32
    return %c0_i32, %c0_i32_0 : i32, i32
  }
  func.func @transform_4(%arg0: i32) -> (i32, i32) {
    %c0_i32 = arith.constant 0 : i32
    %c0_i32_0 = arith.constant 0 : i32
    return %c0_i32, %arg0 : i32, i32
  }
}

</mosaic_0001>

<llo_original>
// kernel: tpu_custom_call.1
$region0: #{tpu_custom_call.1}
  #allocation0 [shape = 'u32[]', space=smem, size = 0x4, offset = 0x4, fixed_abs, tag = 'smem constant byte address 0x4 - core index']
  #allocation1 [shape = 'u32[144,128]{1,0:T(1,128)}', space=vmem, size = 0x12000, scoped, tag = 'internal scratch']
  %s0 = inlined_call_operand.vmem [shape: bf16[112,128], index: 0, kind: input, shape index: {}]
  %s1 = inlined_call_operand.vmem [shape: bf16[80,112], index: 1, kind: input, shape index: {}]
  %s2 = inlined_call_operand.vmem [shape: bf16[128,80], index: 2, kind: input, shape index: {}]
  %s3 = inlined_call_operand.hbm [shape: bf16[64,128], index: 3, kind: input, shape index: {}]
  %s4 = inlined_call_operand.hbm [shape: bf16[64,128], index: 4, kind: output, shape index: {}]
  %s5 = sld [smem:[#allocation0]]
  $region30: #{tpu_custom_call.1} parent=0
    _
  %s7 = ssub.s32 1, %s5
  %s8 = scalar_select 0, %s7, %s5
  $region1: #{tpu_custom_call.1} parent=0
    #allocation2 [shape = 'u8[16384]{0}', space=vmem, size = 0x4000, scoped, tag = 'input window, operand 3, single buffered']
    #allocation3 [shape = 's32[1]{0}', space=sflag, size = 0x4, scoped, tag = 'scoped memory for tpu_custom_call.1']
    #allocation4 [shape = 's32[1]{0}', space=sflag, size = 0x4, scoped, tag = 'scoped memory for tpu_custom_call.1']
    #allocation5 [shape = 'u8[16384]{0}', space=vmem, size = 0x4000, scoped, tag = 'output window, operand 0, single buffered']
    %9 = vsyncpa [#allocation3], 0
    %10 = vsyncpa [#allocation4], 0
    // Predicated region
    $region2: #{tpu_custom_call.1} parent=1 // pred_check
      _
    $region3: #{tpu_custom_call.1} parent=1 // pred_check_branch
      %12 = sbr.rel (0) target = $region5
    $region4: #{tpu_custom_call.1} parent=1 // pred_region
      _
    $region5: #{tpu_custom_call.1} parent=1 // pred_fallthru
      _
    // Predicated region
    $region6: #{tpu_custom_call.1} parent=1 // pred_check
      _
    $region7: #{tpu_custom_call.1} parent=1 // pred_check_branch
      %14 = sbr.rel (0) target = $region9
    $region8: #{tpu_custom_call.1} parent=1 // pred_region
      _
    $region9: #{tpu_custom_call.1} parent=1 // pred_fallthru
      _
    // Predicated region
    $region10: #{tpu_custom_call.1} parent=1 // pred_check
      _
    $region11: #{tpu_custom_call.1} parent=1 // pred_check_branch
      %16 = sbr.rel (0) target = $region13
    $region12: #{tpu_custom_call.1} parent=1 // pred_region
      _
    $region13: #{tpu_custom_call.1} parent=1 // pred_fallthru
      _
    // Predicated region
    $region14: #{tpu_custom_call.1} parent=1 // pred_check
      _
    $region15: #{tpu_custom_call.1} parent=1 // pred_check_branch
      %18 = sbr.rel (0) target = $region17
    $region16: #{tpu_custom_call.1} parent=1 // pred_region
      %s20 = ssub.s32 512, 512
      %21 = vsyncadd [#allocation3], %s20
      %s22 = sshll.u32 [#allocation2], 4
      %s23 = int_to_ptr.vmem [resolvable:$true] %s22
      %28 = dma.hbm_to_vmem [thread:$0]  %s3, 512, %s23, [#allocation3], 64, 64, 4
    $region17: #{tpu_custom_call.1} parent=1 // pred_fallthru
      _
    // Predicated region
    $region18: #{tpu_custom_call.1} parent=1 // pred_check
      _
    $region19: #{tpu_custom_call.1} parent=1 // pred_check_branch
      %30 = sbr.rel (0) target = $region21
    $region20: #{tpu_custom_call.1} parent=1 // pred_region
      %31 = dma.done [#allocation3], 512
    $region21: #{tpu_custom_call.1} parent=1 // pred_fallthru
      _
    %v33 = vld [vmem:[%s0] sm:$0xf]
    %v34 = vld [vmem:[%s0 + $0x4] sm:$0xf]
    %v35 = vld [vmem:[%s0 + $0x8] sm:$0xf]
    %v36 = vld [vmem:[%s0 + $0xc] sm:$0xf]
    %v37 = vld [vmem:[%s0 + $0x10] sm:$0xf]
    %v38 = vld [vmem:[%s0 + $0x14] sm:$0xf]
    %v39 = vld [vmem:[%s0 + $0x18] sm:$0xf]
    %v40 = vld [vmem:[%s0 + $0x1c] sm:$0xf]
    %v41 = vld [vmem:[%s0 + $0x20] sm:$0xf]
    %v42 = vld [vmem:[%s0 + $0x24] sm:$0xf]
    %v43 = vld [vmem:[%s0 + $0x28] sm:$0xf]
    %v44 = vld [vmem:[%s0 + $0x2c] sm:$0xf]
    %v45 = vld [vmem:[%s0 + $0x30] sm:$0xf]
    %v46 = vld [vmem:[%s0 + $0x34] sm:$0xf]
    %v47 = vld [vmem:[%s1] sm:$0xf]
    %v48 = vld [vmem:[%s1 + $0x4] sm:$0xf]
    %v49 = vld [vmem:[%s1 + $0x8] sm:$0xf]
    %v50 = vld [vmem:[%s1 + $0xc] sm:$0xf]
    %v51 = vld [vmem:[%s1 + $0x10] sm:$0xf]
    %v52 = vld [vmem:[%s1 + $0x14] sm:$0xf]
    %v53 = vld [vmem:[%s1 + $0x18] sm:$0xf]
    %v54 = vld [vmem:[%s1 + $0x1c] sm:$0xf]
    %v55 = vld [vmem:[%s1 + $0x20] sm:$0xf]
    %v56 = vld [vmem:[%s1 + $0x24] sm:$0xf]
    %v67 = vunpack.c.l.b16 %v47
    %v68 = vunpack.c.l.b16 %v48
    %v69 = vunpack.c.l.b16 %v49
    %v70 = vunpack.c.l.b16 %v50
    %v71 = vunpack.c.l.b16 %v51
    %v72 = vunpack.c.l.b16 %v52
    %v73 = vunpack.c.l.b16 %v53
    %v74 = vunpack.c.l.b16 %v54
    %v75 = vunpack.c.l.b16 %v55
    %v76 = vunpack.c.l.b16 %v56
    %v77 = vpack.c.b16 %v68, %v67
    %v78 = vpack.c.b16 %v70, %v69
    %v79 = vpack.c.b16 %v72, %v71
    %v80 = vpack.c.b16 %v74, %v73
    %v81 = vpack.c.b16 %v76, %v75
    %v96 = vunpack.c.l.b16 %v33
    %v97 = vunpack.c.l.b16 %v34
    %v98 = vunpack.c.l.b16 %v35
    %v99 = vunpack.c.l.b16 %v36
    %v100 = vunpack.c.l.b16 %v37
    %v101 = vunpack.c.l.b16 %v38
    %v102 = vunpack.c.l.b16 %v39
    %v103 = vunpack.c.l.b16 %v40
    %v104 = vunpack.c.l.b16 %v41
    %v105 = vunpack.c.l.b16 %v42
    %v106 = vunpack.c.l.b16 %v43
    %v107 = vunpack.c.l.b16 %v44
    %v108 = vunpack.c.l.b16 %v45
    %v109 = vunpack.c.l.b16 %v46
    %v110 = vpack.c.b16 %v97, %v96
    %v111 = vpack.c.b16 %v99, %v98
    %v112 = vpack.c.b16 %v101, %v100
    %v113 = vpack.c.b16 %v103, %v102
    %v114 = vpack.c.b16 %v105, %v104
    %v115 = vpack.c.b16 %v107, %v106
    %v116 = vpack.c.b16 %v109, %v108
    %vm124 = vcmask 916480
    %v126 = vsel %vm124, %v77, 0
    %v129 = vsel %vm124, %v78, 0
    %v132 = vsel %vm124, %v79, 0
    %v135 = vsel %vm124, %v80, 0
    %v138 = vsel %vm124, %v81, 0
    %140 = vmatprep.subr.bf16.mxu0 0
    %141 = vmatpush1.bf16.msra.mxu0 %v110
    %142 = vmatprep.subr.bf16.mxu0 0
    %143 = vmatpush1.bf16.msra.mxu0 %v111
    %144 = vmatprep.subr.bf16.mxu0 0
    %145 = vmatpush1.bf16.msra.mxu0 %v112
    %146 = vmatprep.subr.bf16.mxu0 0
    %147 = vmatpush1.bf16.msra.mxu0 %v113
    %148 = vmatprep.subr.bf16.mxu0 0
    %149 = vmatpush1.bf16.msra.mxu0 %v114
    %150 = vmatprep.subr.bf16.mxu0 0
    %151 = vmatpush1.bf16.msra.mxu0 %v115
    %152 = vmatprep.subr.bf16.mxu0 0
    %153 = vmatpush1.bf16.msra.mxu0 %v116
    %154 = vmatprep.subr.bf16.mxu0 0
    %155 = vmatpush1.bf16.msra.mxu0 0
    %156 = vmatprep.subr.bf16.mxu0 0
    %157 = vmatpush1.bf16.msra.mxu0 0
    %158 = vmatprep.subr.bf16.mxu0 0
    %159 = vmatpush1.bf16.msra.mxu0 0
    %160 = vmatprep.subr.bf16.mxu0 0
    %161 = vmatpush1.bf16.msra.mxu0 0
    %162 = vmatprep.subr.bf16.mxu0 0
    %163 = vmatpush1.bf16.msra.mxu0 0
    %164 = vmatprep.subr.bf16.mxu0 0
    %165 = vmatpush1.bf16.msra.mxu0 0
    %166 = vmatprep.subr.bf16.mxu0 0
    %167 = vmatpush1.bf16.msra.mxu0 0
    %168 = vmatprep.subr.bf16.mxu0 0
    %169 = vmatpush1.bf16.msra.mxu0 0
    %170 = vmatprep.subr.bf16.mxu0 0
    %171 = vmatpush1.bf16.msra.mxu0 0
    %172 = vmatprep.mubr.bf16.mxu0 0
    %173 = vmatmul.mubr.bf16.gmra.mrb[0].mxu0 %v126
    %v174 = vpop.f32.mrb[0].mxu0
    %v175 = vadd.f32 0.0, %v174
    %v176 = vpop.f32.mrb[0].mxu0
    %v177 = vpop.f32.mrb[0].mxu0
    %v178 = vadd.f32 0.0, %v177
    %v179 = vpop.f32.mrb[0].mxu0
    %180 = vmatprep.mubr.bf16.mxu0 0
    %181 = vmatmul.mubr.bf16.gmra.mrb[0].mxu0 %v129
    %v182 = vpop.f32.mrb[0].mxu0
    %v183 = vadd.f32 0.0, %v182
    %v184 = vpop.f32.mrb[0].mxu0
    %v185 = vpop.f32.mrb[0].mxu0
    %v186 = vadd.f32 0.0, %v185
    %v187 = vpop.f32.mrb[0].mxu0
    %188 = vmatprep.mubr.bf16.mxu0 0
    %189 = vmatmul.mubr.bf16.gmra.mrb[0].mxu0 %v132
    %v190 = vpop.f32.mrb[0].mxu0
    %v191 = vadd.f32 0.0, %v190
    %v192 = vpop.f32.mrb[0].mxu0
    %v193 = vpop.f32.mrb[0].mxu0
    %v194 = vadd.f32 0.0, %v193
    %v195 = vpop.f32.mrb[0].mxu0
    %196 = vmatprep.mubr.bf16.mxu0 0
    %197 = vmatmul.mubr.bf16.gmra.mrb[0].mxu0 %v135
    %v198 = vpop.f32.mrb[0].mxu0
    %v199 = vadd.f32 0.0, %v198
    %v200 = vpop.f32.mrb[0].mxu0
    %v201 = vpop.f32.mrb[0].mxu0
    %v202 = vadd.f32 0.0, %v201
    %v203 = vpop.f32.mrb[0].mxu0
    %204 = vmatprep.mubr.bf16.mxu0 0
    %205 = vmatmul.mubr.bf16.gmra.mrb[0].mxu0 %v138
    %v206 = vpop.f32.mrb[0].mxu0
    %v207 = vadd.f32 0.0, %v206
    %v208 = vpop.f32.mrb[0].mxu0
    %v209 = vpop.f32.mrb[0].mxu0
    %v210 = vadd.f32 0.0, %v209
    %v211 = vpop.f32.mrb[0].mxu0
    %212 = vdwg.mxu0
    %v213 = vmax.f32 %v175, 0.0
    %v214 = vmax.f32 %v178, 0.0
    %v215 = vmax.f32 %v183, 0.0
    %v216 = vmax.f32 %v186, 0.0
    %v217 = vmax.f32 %v191, 0.0
    %v218 = vmax.f32 %v194, 0.0
    %v219 = vmax.f32 %v199, 0.0
    %v220 = vmax.f32 %v202, 0.0
    %v221 = vmax.f32 %v207, 0.0
    %v222 = vmax.f32 %v210, 0.0
    %v223 = vpack.c.bf16 %v214, %v213
    %v224 = vpack.c.bf16 %v216, %v215
    %v225 = vpack.c.bf16 %v218, %v217
    %v226 = vpack.c.bf16 %v220, %v219
    %v227 = vpack.c.bf16 %v222, %v221
    %v228 = vld [vmem:[%s2] sm:$0xf]
    %v229 = vld [vmem:[%s2 + $0x4] sm:$0xf]
    %v230 = vld [vmem:[%s2 + $0x8] sm:$0xf]
    %v231 = vld [vmem:[%s2 + $0xc] sm:$0xf]
    %v232 = vld [vmem:[%s2 + $0x10] sm:$0xf]
    %v233 = vld [vmem:[%s2 + $0x14] sm:$0xf]
    %v234 = vld [vmem:[%s2 + $0x18] sm:$0xf]
    %v235 = vld [vmem:[%s2 + $0x1c] sm:$0xf]
    %v236 = vld [vmem:[%s2 + $0x20] sm:$0xf]
    %v237 = vld [vmem:[%s2 + $0x24] sm:$0xf]
    %v238 = vld [vmem:[%s2 + $0x28] sm:$0xf]
    %v239 = vld [vmem:[%s2 + $0x2c] sm:$0xf]
    %v240 = vld [vmem:[%s2 + $0x30] sm:$0xf]
    %v241 = vld [vmem:[%s2 + $0x34] sm:$0xf]
    %v242 = vld [vmem:[%s2 + $0x38] sm:$0xf]
    %v243 = vld [vmem:[%s2 + $0x3c] sm:$0xf]
    %v260 = vunpack.c.l.b16 %v228
    %v261 = vunpack.c.l.b16 %v229
    %v262 = vunpack.c.l.b16 %v230
    %v263 = vunpack.c.l.b16 %v231
    %v264 = vunpack.c.l.b16 %v232
    %v265 = vunpack.c.l.b16 %v233
    %v266 = vunpack.c.l.b16 %v234
    %v267 = vunpack.c.l.b16 %v235
    %v268 = vunpack.c.l.b16 %v236
    %v269 = vunpack.c.l.b16 %v237
    %v270 = vunpack.c.l.b16 %v238
    %v271 = vunpack.c.l.b16 %v239
    %v272 = vunpack.c.l.b16 %v240
    %v273 = vunpack.c.l.b16 %v241
    %v274 = vunpack.c.l.b16 %v242
    %v275 = vunpack.c.l.b16 %v243
    %v276 = vpack.c.b16 %v261, %v260
    %v277 = vpack.c.b16 %v263, %v262
    %v278 = vpack.c.b16 %v265, %v264
    %v279 = vpack.c.b16 %v267, %v266
    %v280 = vpack.c.b16 %v269, %v268
    %v281 = vpack.c.b16 %v271, %v270
    %v282 = vpack.c.b16 %v273, %v272
    %v283 = vpack.c.b16 %v275, %v274
    %vm284 = vcmask 654336
    %v286 = vsel %vm284, %v276, 0
    %v289 = vsel %vm284, %v277, 0
    %v292 = vsel %vm284, %v278, 0
    %v295 = vsel %vm284, %v279, 0
    %v298 = vsel %vm284, %v280, 0
    %v301 = vsel %vm284, %v281, 0
    %v304 = vsel %vm284, %v282, 0
    %v307 = vsel %vm284, %v283, 0
    %309 = vmatprep.subr.bf16.mxu0 0
    %310 = vmatpush1.bf16.msra.mxu0 %v223
    %311 = vmatprep.subr.bf16.mxu0 0
    %312 = vmatpush1.bf16.msra.mxu0 %v224
    %313 = vmatprep.subr.bf16.mxu0 0
    %314 = vmatpush1.bf16.msra.mxu0 %v225
    %315 = vmatprep.subr.bf16.mxu0 0
    %316 = vmatpush1.bf16.msra.mxu0 %v226
    %317 = vmatprep.subr.bf16.mxu0 0
    %318 = vmatpush1.bf16.msra.mxu0 %v227
    %319 = vmatprep.subr.bf16.mxu0 0
    %320 = vmatpush1.bf16.msra.mxu0 0
    %321 = vmatprep.subr.bf16.mxu0 0
    %322 = vmatpush1.bf16.msra.mxu0 0
    %323 = vmatprep.subr.bf16.mxu0 0
    %324 = vmatpush1.bf16.msra.mxu0 0
    %325 = vmatprep.subr.bf16.mxu0 0
    %326 = vmatpush1.bf16.msra.mxu0 0
    %327 = vmatprep.subr.bf16.mxu0 0
    %328 = vmatpush1.bf16.msra.mxu0 0
    %329 = vmatprep.subr.bf16.mxu0 0
    %330 = vmatpush1.bf16.msra.mxu0 0
    %331 = vmatprep.subr.bf16.mxu0 0
    %332 = vmatpush1.bf16.msra.mxu0 0
    %333 = vmatprep.subr.bf16.mxu0 0
    %334 = vmatpush1.bf16.msra.mxu0 0
    %335 = vmatprep.subr.bf16.mxu0 0
    %336 = vmatpush1.bf16.msra.mxu0 0
    %337 = vmatprep.subr.bf16.mxu0 0
    %338 = vmatpush1.bf16.msra.mxu0 0
    %339 = vmatprep.subr.bf16.mxu0 0
    %340 = vmatpush1.bf16.msra.mxu0 0
    %341 = vmatprep.mubr.bf16.mxu0 0
    %342 = vmatmul.mubr.bf16.gmra.mrb[0].mxu0 %v286
    %v343 = vpop.f32.mrb[0].mxu0
    %v344 = vadd.f32 0.0, %v343
    %v345 = vpop.f32.mrb[0].mxu0
    %v346 = vpop.f32.mrb[0].mxu0
    %v347 = vadd.f32 0.0, %v346
    %v348 = vpop.f32.mrb[0].mxu0
    %349 = vmatprep.mubr.bf16.mxu0 0
    %350 = vmatmul.mubr.bf16.gmra.mrb[0].mxu0 %v289
    %v351 = vpop.f32.mrb[0].mxu0
    %v352 = vadd.f32 0.0, %v351
    %v353 = vpop.f32.mrb[0].mxu0
    %v354 = vpop.f32.mrb[0].mxu0
    %v355 = vadd.f32 0.0, %v354
    %v356 = vpop.f32.mrb[0].mxu0
    %357 = vmatprep.mubr.bf16.mxu0 0
    %358 = vmatmul.mubr.bf16.gmra.mrb[0].mxu0 %v292
    %v359 = vpop.f32.mrb[0].mxu0
    %v360 = vadd.f32 0.0, %v359
    %v361 = vpop.f32.mrb[0].mxu0
    %v362 = vpop.f32.mrb[0].mxu0
    %v363 = vadd.f32 0.0, %v362
    %v364 = vpop.f32.mrb[0].mxu0
    %365 = vmatprep.mubr.bf16.mxu0 0
    %366 = vmatmul.mubr.bf16.gmra.mrb[0].mxu0 %v295
    %v367 = vpop.f32.mrb[0].mxu0
    %v368 = vadd.f32 0.0, %v367
    %v369 = vpop.f32.mrb[0].mxu0
    %v370 = vpop.f32.mrb[0].mxu0
    %v371 = vadd.f32 0.0, %v370
    %v372 = vpop.f32.mrb[0].mxu0
    %373 = vmatprep.mubr.bf16.mxu0 0
    %374 = vmatmul.mubr.bf16.gmra.mrb[0].mxu0 %v298
    %v375 = vpop.f32.mrb[0].mxu0
    %v376 = vadd.f32 0.0, %v375
    %v377 = vpop.f32.mrb[0].mxu0
    %v378 = vpop.f32.mrb[0].mxu0
    %v379 = vadd.f32 0.0, %v378
    %v380 = vpop.f32.mrb[0].mxu0
    %381 = vmatprep.mubr.bf16.mxu0 0
    %382 = vmatmul.mubr.bf16.gmra.mrb[0].mxu0 %v301
    %v383 = vpop.f32.mrb[0].mxu0
    %v384 = vadd.f32 0.0, %v383
    %v385 = vpop.f32.mrb[0].mxu0
    %v386 = vpop.f32.mrb[0].mxu0
    %v387 = vadd.f32 0.0, %v386
    %v388 = vpop.f32.mrb[0].mxu0
    %389 = vmatprep.mubr.bf16.mxu0 0
    %390 = vmatmul.mubr.bf16.gmra.mrb[0].mxu0 %v304
    %v391 = vpop.f32.mrb[0].mxu0
    %v392 = vadd.f32 0.0, %v391
    %v393 = vpop.f32.mrb[0].mxu0
    %v394 = vpop.f32.mrb[0].mxu0
    %v395 = vadd.f32 0.0, %v394
    %v396 = vpop.f32.mrb[0].mxu0
    %397 = vmatprep.mubr.bf16.mxu0 0
    %398 = vmatmul.mubr.bf16.gmra.mrb[0].mxu0 %v307
    %v399 = vpop.f32.mrb[0].mxu0
    %v400 = vadd.f32 0.0, %v399
    %v401 = vpop.f32.mrb[0].mxu0
    %v402 = vpop.f32.mrb[0].mxu0
    %v403 = vadd.f32 0.0, %v402
    %v404 = vpop.f32.mrb[0].mxu0
    %405 = vdwg.mxu0
    %v406 = vmax.f32 %v344, 0.0
    %v407 = vmax.f32 %v347, 0.0
    %v408 = vmax.f32 %v352, 0.0
    %v409 = vmax.f32 %v355, 0.0
    %v410 = vmax.f32 %v360, 0.0
    %v411 = vmax.f32 %v363, 0.0
    %v412 = vmax.f32 %v368, 0.0
    %v413 = vmax.f32 %v371, 0.0
    %v414 = vmax.f32 %v376, 0.0
    %v415 = vmax.f32 %v379, 0.0
    %v416 = vmax.f32 %v384, 0.0
    %v417 = vmax.f32 %v387, 0.0
    %v418 = vmax.f32 %v392, 0.0
    %v419 = vmax.f32 %v395, 0.0
    %v420 = vmax.f32 %v400, 0.0
    %v421 = vmax.f32 %v403, 0.0
    %v422 = vpack.c.bf16 %v407, %v406
    %v423 = vpack.c.bf16 %v409, %v408
    %v424 = vpack.c.bf16 %v411, %v410
    %v425 = vpack.c.bf16 %v413, %v412
    %v426 = vpack.c.bf16 %v415, %v414
    %v427 = vpack.c.bf16 %v417, %v416
    %v428 = vpack.c.bf16 %v419, %v418
    %v429 = vpack.c.bf16 %v421, %v420
    %v430 = vld [vmem:[#allocation2] sm:$0xf]
    %v431 = vld [vmem:[#allocation2 + $0x4] sm:$0xf]
    %v432 = vld [vmem:[#allocation2 + $0x8] sm:$0xf]
    %v433 = vld [vmem:[#allocation2 + $0xc] sm:$0xf]
    %v434 = vld [vmem:[#allocation2 + $0x10] sm:$0xf]
    %v435 = vld [vmem:[#allocation2 + $0x14] sm:$0xf]
    %v436 = vld [vmem:[#allocation2 + $0x18] sm:$0xf]
    %v437 = vld [vmem:[#allocation2 + $0x1c] sm:$0xf]
    %v446 = vunpack.c.l.b16 %v430
    %v447 = vunpack.c.l.b16 %v431
    %v448 = vunpack.c.l.b16 %v432
    %v449 = vunpack.c.l.b16 %v433
    %v450 = vunpack.c.l.b16 %v434
    %v451 = vunpack.c.l.b16 %v435
    %v452 = vunpack.c.l.b16 %v436
    %v453 = vunpack.c.l.b16 %v437
    %v454 = vpack.c.b16 %v447, %v446
    %v455 = vpack.c.b16 %v449, %v448
    %v456 = vpack.c.b16 %v451, %v450
    %v457 = vpack.c.b16 %v453, %v452
    %462 = vmatprep.subr.bf16.mxu0 0
    %463 = vmatpush1.bf16.msra.mxu0 %v422
    %464 = vmatprep.subr.bf16.mxu0 0
    %465 = vmatpush1.bf16.msra.mxu0 %v423
    %466 = vmatprep.subr.bf16.mxu0 0
    %467 = vmatpush1.bf16.msra.mxu0 %v424
    %468 = vmatprep.subr.bf16.mxu0 0
    %469 = vmatpush1.bf16.msra.mxu0 %v425
    %470 = vmatprep.subr.bf16.mxu0 0
    %471 = vmatpush1.bf16.msra.mxu0 %v426
    %472 = vmatprep.subr.bf16.mxu0 0
    %473 = vmatpush1.bf16.msra.mxu0 %v427
    %474 = vmatprep.subr.bf16.mxu0 0
    %475 = vmatpush1.bf16.msra.mxu0 %v428
    %476 = vmatprep.subr.bf16.mxu0 0
    %477 = vmatpush1.bf16.msra.mxu0 %v429
    %478 = vmatprep.subr.bf16.mxu0 0
    %479 = vmatpush1.bf16.msra.mxu0 0
    %480 = vmatprep.subr.bf16.mxu0 0
    %481 = vmatpush1.bf16.msra.mxu0 0
    %482 = vmatprep.subr.bf16.mxu0 0
    %483 = vmatpush1.bf16.msra.mxu0 0
    %484 = vmatprep.subr.bf16.mxu0 0
    %485 = vmatpush1.bf16.msra.mxu0 0
    %486 = vmatprep.subr.bf16.mxu0 0
    %487 = vmatpush1.bf16.msra.mxu0 0
    %488 = vmatprep.subr.bf16.mxu0 0
    %489 = vmatpush1.bf16.msra.mxu0 0
    %490 = vmatprep.subr.bf16.mxu0 0
    %491 = vmatpush1.bf16.msra.mxu0 0
    %492 = vmatprep.subr.bf16.mxu0 0
    %493 = vmatpush1.bf16.msra.mxu0 0
    %494 = vmatprep.mubr.bf16.mxu0 0
    %495 = vmatmul.mubr.bf16.gmra.mrb[0].mxu0 %v454
    %v496 = vpop.f32.mrb[0].mxu0
    %v497 = vadd.f32 0.0, %v496
    %v498 = vpop.f32.mrb[0].mxu0
    %v499 = vpop.f32.mrb[0].mxu0
    %v500 = vadd.f32 0.0, %v499
    %v501 = vpop.f32.mrb[0].mxu0
    %502 = vmatprep.mubr.bf16.mxu0 0
    %503 = vmatmul.mubr.bf16.gmra.mrb[0].mxu0 %v455
    %v504 = vpop.f32.mrb[0].mxu0
    %v505 = vadd.f32 0.0, %v504
    %v506 = vpop.f32.mrb[0].mxu0
    %v507 = vpop.f32.mrb[0].mxu0
    %v508 = vadd.f32 0.0, %v507
    %v509 = vpop.f32.mrb[0].mxu0
    %510 = vmatprep.mubr.bf16.mxu0 0
    %511 = vmatmul.mubr.bf16.gmra.mrb[0].mxu0 %v456
    %v512 = vpop.f32.mrb[0].mxu0
    %v513 = vadd.f32 0.0, %v512
    %v514 = vpop.f32.mrb[0].mxu0
    %v515 = vpop.f32.mrb[0].mxu0
    %v516 = vadd.f32 0.0, %v515
    %v517 = vpop.f32.mrb[0].mxu0
    %518 = vmatprep.mubr.bf16.mxu0 0
    %519 = vmatmul.mubr.bf16.gmra.mrb[0].mxu0 %v457
    %v520 = vpop.f32.mrb[0].mxu0
    %v521 = vadd.f32 0.0, %v520
    %v522 = vpop.f32.mrb[0].mxu0
    %v523 = vpop.f32.mrb[0].mxu0
    %v524 = vadd.f32 0.0, %v523
    %v525 = vpop.f32.mrb[0].mxu0
    %526 = vdwg.mxu0
    %v527 = vpack.c.bf16 %v500, %v497
    %v528 = vpack.c.bf16 %v508, %v505
    %v529 = vpack.c.bf16 %v516, %v513
    %v530 = vpack.c.bf16 %v524, %v521
    %v535 = vunpack.c.l.b16 %v527
    %v536 = vunpack.c.h.b16 %v527
    %v537 = vunpack.c.l.b16 %v528
    %v538 = vunpack.c.h.b16 %v528
    %v539 = vunpack.c.l.b16 %v529
    %v540 = vunpack.c.h.b16 %v529
    %v541 = vunpack.c.l.b16 %v530
    %v542 = vunpack.c.h.b16 %v530
    %v543 = vpack.c.b16 %v535, %v535
    %v544 = vpack.c.b16 %v536, %v536
    %v545 = vpack.c.b16 %v537, %v537
    %v546 = vpack.c.b16 %v538, %v538
    %v547 = vpack.c.b16 %v539, %v539
    %v548 = vpack.c.b16 %v540, %v540
    %v549 = vpack.c.b16 %v541, %v541
    %v550 = vpack.c.b16 %v542, %v542
    %559 = vst [vmem:[#allocation5] sm:$0xf] %v543
    %560 = vst [vmem:[#allocation5 + $0x4] sm:$0xf] %v544
    %561 = vst [vmem:[#allocation5 + $0x8] sm:$0xf] %v545
    %562 = vst [vmem:[#allocation5 + $0xc] sm:$0xf] %v546
    %563 = vst [vmem:[#allocation5 + $0x10] sm:$0xf] %v547
    %564 = vst [vmem:[#allocation5 + $0x14] sm:$0xf] %v548
    %565 = vst [vmem:[#allocation5 + $0x18] sm:$0xf] %v549
    %566 = vst [vmem:[#allocation5 + $0x1c] sm:$0xf] %v550
    // Predicated region
    $region22: #{tpu_custom_call.1} parent=1 // pred_check
      _
    $region23: #{tpu_custom_call.1} parent=1 // pred_check_branch
      %568 = sbr.rel (0) target = $region25
    $region24: #{tpu_custom_call.1} parent=1 // pred_region
      %s570 = ssub.s32 512, 512
      %571 = vsyncadd [#allocation4], %s570
      %s572 = sshll.u32 [#allocation5], 4
      %s573 = int_to_ptr.vmem [resolvable:$true] %s572
      %578 = dma.vmem_to_hbm [thread:$0]  %s573, 512, %s4, [#allocation4], 64, 64, 4
    $region25: #{tpu_custom_call.1} parent=1 // pred_fallthru
      _
    // Predicated region
    $region26: #{tpu_custom_call.1} parent=1 // pred_check
      _
    $region27: #{tpu_custom_call.1} parent=1 // pred_check_branch
      %580 = sbr.rel (0) target = $region29
    $region28: #{tpu_custom_call.1} parent=1 // pred_region
      %581 = dma.done [#allocation4], 512
    $region29: #{tpu_custom_call.1} parent=1 // pred_fallthru
      _
    %582 = vsyncpa [#allocation3], 1
    %583 = vsyncpa [#allocation4], 1

</llo_original>
